<compile_context>
chip_gen: v7x
topology: tpu7x:2x2x1
jax: 0.10.0
libtpu: 0.0.40
codegen_flags: <defaults>
</compile_context>

<pallas_src>
import functools
import math

import jax
import jax.numpy as jnp
from jax.experimental import pallas as pl
from jax.experimental.pallas import tpu as pltpu


_MAX_TILE_ROWS = 2048


def _row_alignment(dtype) -> int:
    # Sublane packing: 8 rows for 4-byte dtypes, 16 for bf16/fp16, 32 for 8-bit.
    itemsize = jnp.dtype(dtype).itemsize
    return max(8, 32 // max(1, itemsize))


@functools.lru_cache(maxsize=None)
def _vmem_capacity_bytes() -> int:
    """Best-effort physical VMEM capacity query; conservative fallback."""
    try:
        cap = getattr(pltpu.get_tpu_info(), "vmem_capacity_bytes", None)
        if cap:
            return int(cap)
    except Exception:
        pass
    try:
        kind = jax.devices()[0].device_kind.lower()
        if "v7" not in kind:
            return 128 * 1024 * 1024  # v5e / v6e
    except Exception:
        pass
    return 64 * 1024 * 1024  # conservative: v7x per-TC VMEM


@functools.lru_cache(maxsize=None)
def _tile_and_vmem_budget():
    """(tile_bytes_target, vmem_limit_bytes), generation-aware.

    Peak VMEM ~= 2x-in + 2x-out double buffers + ~2 tile-sized f32 temporaries
    (worst case bf16 I/O ~= 10x tile bytes), so the tile target keeps a wide
    margin under the scoped limit on both 64 MiB and 128 MiB parts.
    """
    cap = _vmem_capacity_bytes()
    if cap >= 100 * 1024 * 1024:                 # 128 MiB parts (v5e / v6e)
        return 8 * 1024 * 1024, 96 * 1024 * 1024
    return 3 * 1024 * 1024, 48 * 1024 * 1024     # 64 MiB parts (v7x)


def _pick_tile_rows(n_rows: int, d_model: int, dtype, max_tile_rows,
                    tile_bytes_target: int, min_grid_steps: int = 2):
    """Choose (tile_rows, grid_rows).

    Preference order:
      (a) the largest sublane-aligned divisor of n_rows (evenly divided grid),
      (b) the largest sublane-aligned tile with a masked final boundary block,
      (c) a single full-extent tile only when there are too few aligned rows.
    The grid is capped so it has >= min_grid_steps steps whenever possible, so
    both v7x TensorCores get work.  No padded input copy is ever made.
    """
    itemsize = jnp.dtype(dtype).itemsize
    align = _row_alignment(dtype)
    if max_tile_rows is None:
        max_tile_rows = tile_bytes_target // max(1, d_model * itemsize)
        max_tile_rows = min(max_tile_rows, _MAX_TILE_ROWS)
    # TODO(synk): for very large d_model (f32 D >~ 200K) add a column-tiled
    # variant (second "arbitrary" grid axis over D accumulating sum(x^2) in a
    # small VMEM scratch) instead of clamping the row tile down to `align`.
    max_tile_rows = max(align, (max_tile_rows // align) * align)

    # Guarantee >= min_grid_steps grid steps when there are enough aligned rows
    # (v7x has 2 TensorCores; a single-block launch strands one of them).
    if n_rows >= min_grid_steps * align:
        cap = max(align, (pl.cdiv(n_rows, min_grid_steps) // align) * align)
        max_tile_rows = min(max_tile_rows, cap)

    if n_rows <= max_tile_rows:
        return n_rows, 1  # single full-extent block (tiny inputs only)

    t = max_tile_rows
    while t >= align:
        if n_rows % t == 0:
            return t, n_rows // t
        t -= align

    # Masked boundary block: Pallas clips the boundary DMAs; rows are
    # independent, so the unwritten padded rows are harmless.
    return max_tile_rows, pl.cdiv(n_rows, max_tile_rows)


def _rmsnorm_kernel(x_ref, w_ref, o_ref, *, eps: float,
                    low_precision_scale: bool):
    # x_ref: (tile_rows, D), w_ref: (1, D), o_ref: (tile_rows, D).
    # Reduction pass: cast on the fly (no resident f32 copy of the tile).
    xf = x_ref[...].astype(jnp.float32)
    ms = jnp.mean(xf * xf, axis=-1, keepdims=True)    # XLU cross-lane reduce
    inv = jax.lax.rsqrt(ms + eps)                     # EUP rsqrt (free slot)
    if low_precision_scale and jnp.dtype(o_ref.dtype) != jnp.float32:
        # rsqrt stays f32; the full-tile multiplies run in the I/O dtype.
        o_ref[...] = (x_ref[...] * inv.astype(o_ref.dtype)
                      * w_ref[...].astype(o_ref.dtype))
    else:
        # f32 scale path: matches the PyTorch module bit-for-bit semantics.
        o_ref[...] = (x_ref[...].astype(jnp.float32) * inv
                      * w_ref[...].astype(jnp.float32)).astype(o_ref.dtype)


def _rmsnorm_packed_kernel(x_ref, w_ref, seg_ref, o_ref, *, eps: float,
                           d_model: int, low_precision_scale: bool):
    # x_ref: (tile_rows, k*D) with k*D == 128 lanes; each 128-lane row packs
    # k independent logical rows.  seg_ref is a (k*D, k*D) block-diagonal 0/1
    # matrix: xsq @ seg gives every lane its own group's sum(x^2), already
    # broadcast — one tiny MXU matmul, no cross-lane relayout.
    xf = x_ref[...].astype(jnp.float32)
    ssq = jnp.dot(xf * xf, seg_ref[...], preferred_element_type=jnp.float32)
    inv = jax.lax.rsqrt(ssq * jnp.float32(1.0 / d_model) + eps)
    if low_precision_scale and jnp.dtype(o_ref.dtype) != jnp.float32:
        o_ref[...] = (x_ref[...] * inv.astype(o_ref.dtype)
                      * w_ref[...].astype(o_ref.dtype))
    else:
        o_ref[...] = (x_ref[...].astype(jnp.float32) * inv
                      * w_ref[...].astype(jnp.float32)).astype(o_ref.dtype)


def rms_norm(x: jax.Array, weight: jax.Array, eps: float = 1e-5,
             max_tile_rows=None, low_precision_scale: bool = False) -> jax.Array:
    """RMSNorm over the last axis: f32 compute, scale by weight, cast back."""
    in_dtype = x.dtype
    d_model = x.shape[-1]
    assert weight.shape == (d_model,)
    lead_shape = x.shape[:-1]
    n_rows = int(math.prod(lead_shape)) if lead_shape else 1

    tile_bytes_target, vmem_limit_bytes = _tile_and_vmem_budget()
    compiler_params = pltpu.CompilerParams(
        # TODO(synk): switch the row axis to pltpu.CORE_PARALLEL on v7x once
        # its grid-divisibility requirements are pinned down; "parallel" plus
        # a >=2-step grid already lets the runtime shard rows across TCs.
        dimension_semantics=("parallel",),
        vmem_limit_bytes=vmem_limit_bytes,
    )

    # Lane-packing for small d_model so stores stay lane-dense (128 lanes).
    pack = 1
    if 0 < d_model < 128 and 128 % d_model == 0:
        k = 128 // d_model
        if k > 1 and n_rows % k == 0:
            pack = k

    if pack > 1:
        rows = n_rows // pack
        dp = pack * d_model                       # == 128
        x2d = x.reshape(rows, dp)
        w2d = jnp.tile(weight, pack).reshape(1, dp)
        grp = jnp.arange(dp, dtype=jnp.int32) // d_model
        seg = (grp[:, None] == grp[None, :]).astype(jnp.float32)

        tile_rows, grid_rows = _pick_tile_rows(
            rows, dp, in_dtype, max_tile_rows, tile_bytes_target)
        kernel = functools.partial(
            _rmsnorm_packed_kernel, eps=eps, d_model=d_model,
            low_precision_scale=low_precision_scale)
        out = pl.pallas_call(
            kernel,
            out_shape=jax.ShapeDtypeStruct((rows, dp), in_dtype),
            grid_spec=pltpu.PrefetchScalarGridSpec(
                num_scalar_prefetch=0,
                grid=(grid_rows,),
                in_specs=[
                    pl.BlockSpec((tile_rows, dp), lambda i: (i, 0)),
                    # Constant-index blocks: a single pipeline buffer would do
                    # (pl.Buffered(1)), but the default costs only ~KiBs.
                    pl.BlockSpec((1, dp), lambda i: (0, 0)),
                    pl.BlockSpec((dp, dp), lambda i: (0, 0)),
                ],
                out_specs=pl.BlockSpec((tile_rows, dp), lambda i: (i, 0)),
            ),
            compiler_params=compiler_params,
        )(x2d, w2d, seg)
    else:
        x2d = x.reshape(n_rows, d_model)
        w2d = weight.reshape(1, d_model)
        tile_rows, grid_rows = _pick_tile_rows(
            n_rows, d_model, in_dtype, max_tile_rows, tile_bytes_target)
        kernel = functools.partial(
            _rmsnorm_kernel, eps=eps, low_precision_scale=low_precision_scale)
        out = pl.pallas_call(
            kernel,
            out_shape=jax.ShapeDtypeStruct((n_rows, d_model), in_dtype),
            grid_spec=pltpu.PrefetchScalarGridSpec(
                num_scalar_prefetch=0,
                grid=(grid_rows,),
                in_specs=[
                    pl.BlockSpec((tile_rows, d_model), lambda i: (i, 0)),
                    pl.BlockSpec((1, d_model), lambda i: (0, 0)),
                ],
                out_specs=pl.BlockSpec((tile_rows, d_model), lambda i: (i, 0)),
            ),
            compiler_params=compiler_params,
        )(x2d, w2d)

    return out.reshape(*lead_shape, d_model)


def rms_norm_ref(x, weight, eps=1e-5):
    in_dtype = x.dtype
    xf = x.astype(jnp.float32)
    inv = jax.lax.rsqrt(jnp.mean(xf * xf, axis=-1, keepdims=True) + eps)
    return (xf * inv * weight.astype(jnp.float32)).astype(in_dtype)


if __name__ == "__main__":
    eps = 1e-5
    key = jax.random.PRNGKey(0)
    kx, kw, kb, kc, kd = jax.random.split(key, 5)

    d_model = 32
    # Deterministic stand-in for nn.init.trunc_normal_ (std=1, truncated at +-2).
    weight = jax.random.truncated_normal(kw, -2.0, 2.0, (d_model,),
                                         dtype=jnp.float32)

    # A) Small-D lane-packed path (D=32 packed 4-per-128-lane row), single tile.
    xa = jax.random.normal(kx, (2, 8, d_model), dtype=jnp.float32)
    outa = rms_norm(xa, weight, eps=eps)
    jax.block_until_ready(outa)
    refa = rms_norm_ref(xa, weight, eps=eps)
    assert outa.shape == xa.shape and outa.dtype == xa.dtype
    # Slightly loose tolerance: the segmented reduction runs on the MXU.
    assert jnp.allclose(outa, refa, atol=1e-4, rtol=1e-4)

    # B) General path with a masked boundary block (20 rows, 8-row tiles, grid=3).
    d_big = 128
    wb = jax.random.truncated_normal(kb, -2.0, 2.0, (d_big,), dtype=jnp.float32)
    xb = jax.random.normal(kc, (2, 10, d_big), dtype=jnp.float32)
    outb = rms_norm(xb, wb, eps=eps)
    jax.block_until_ready(outb)
    assert jnp.allclose(outb, rms_norm_ref(xb, wb, eps=eps),
                        atol=1e-5, rtol=1e-5)

    # C) General path, even multi-step grid (64 rows / 16-row tiles, grid=4).
    xc = jax.random.normal(kd, (4, 16, d_big), dtype=jnp.float32)
    outc = rms_norm(xc, wb, eps=eps, max_tile_rows=16)
    jax.block_until_ready(outc)
    assert jnp.allclose(outc, rms_norm_ref(xc, wb, eps=eps),
                        atol=1e-5, rtol=1e-5)

    # D) bf16 I/O on the packed path with the optional low-precision scale.
    xd = jax.random.normal(kx, (2, 10, d_model), dtype=jnp.bfloat16)
    wd = weight.astype(jnp.bfloat16)
    outd = rms_norm(xd, wd, eps=eps, low_precision_scale=True)
    jax.block_until_ready(outd)
    refd = rms_norm_ref(xd, wd, eps=eps)
    assert outd.shape == xd.shape and outd.dtype == jnp.bfloat16
    assert jnp.allclose(outd.astype(jnp.float32), refd.astype(jnp.float32),
                        atol=3e-2, rtol=3e-2)

    print("KERNEL_OK")
</pallas_src>

<mosaic_0001>
module attributes {stable_mosaic.version = 11 : i64} {
  func.func @_rmsnorm_packed_kernel(%arg0: i32, %arg1: memref<4x128xf32, #tpu.memory_space<vmem>>, %arg2: memref<1x128xf32, #tpu.memory_space<vmem>>, %arg3: memref<128x128xf32, #tpu.memory_space<vmem>>, %arg4: memref<4x128xf32, #tpu.memory_space<vmem>>) attributes {dimension_semantics = [#tpu.dimension_semantics<parallel>], iteration_bounds = array<i64: 1>, scalar_prefetch = 0 : i64, scratch_operands = 0 : i64, tpu.core_type = #tpu.core_type<tc>, window_params = [{transform_indices = @transform_0, window_bounds = array<i64: 4, 128>}, {pipeline_mode = #tpu.pipeline_mode<synchronous>, transform_indices = @transform_1, window_bounds = array<i64: 1, 128>}, {pipeline_mode = #tpu.pipeline_mode<synchronous>, transform_indices = @transform_2, window_bounds = array<i64: 128, 128>}, {transform_indices = @transform_3, window_bounds = array<i64: 4, 128>}]} {
    %c0 = arith.constant 0 : index
    %c0_0 = arith.constant 0 : index
    %0 = vector.load %arg1[%c0, %c0_0] : memref<4x128xf32, #tpu.memory_space<vmem>>, vector<4x128xf32>
    %1 = arith.mulf %0, %0 : vector<4x128xf32>
    %c0_1 = arith.constant 0 : index
    %c0_2 = arith.constant 0 : index
    %2 = vector.load %arg3[%c0_1, %c0_2] : memref<128x128xf32, #tpu.memory_space<vmem>>, vector<128x128xf32>
    %cst = arith.constant dense<0.000000e+00> : vector<4x128xf32>
    %3 = tpu.matmul %1, %2, %cst {dimension_numbers = #tpu.dot_dimension_numbers<[1], [0], [0], [1], [0, 0, 1, 1], [], []>} : vector<4x128xf32>, vector<128x128xf32>, vector<4x128xf32> -> vector<4x128xf32>
    %cst_3 = arith.constant 3.125000e-02 : f32
    %4 = vector.broadcast %cst_3 : f32 to vector<4x128xf32>
    %5 = arith.mulf %3, %4 : vector<4x128xf32>
    %cst_4 = arith.constant 9.99999974E-6 : f32
    %6 = vector.broadcast %cst_4 : f32 to vector<4x128xf32>
    %7 = arith.addf %5, %6 : vector<4x128xf32>
    %8 = math.rsqrt %7 : vector<4x128xf32>
    %c0_5 = arith.constant 0 : index
    %c0_6 = arith.constant 0 : index
    %9 = vector.load %arg1[%c0_5, %c0_6] : memref<4x128xf32, #tpu.memory_space<vmem>>, vector<4x128xf32>
    %10 = arith.mulf %9, %8 : vector<4x128xf32>
    %c0_7 = arith.constant 0 : index
    %c0_8 = arith.constant 0 : index
    %11 = vector.load %arg2[%c0_7, %c0_8] : memref<1x128xf32, #tpu.memory_space<vmem>>, vector<1x128xf32>
    %12 = vector.broadcast %11 : vector<1x128xf32> to vector<4x128xf32>
    %13 = arith.mulf %10, %12 : vector<4x128xf32>
    %c0_9 = arith.constant 0 : index
    %c0_10 = arith.constant 0 : index
    %14 = vector.load %arg4[%c0_9, %c0_10] : memref<4x128xf32, #tpu.memory_space<vmem>>, vector<4x128xf32>
    tpu.vector_store %arg4[%c0_9, %c0_10], %13 {strides = array<i32>} : memref<4x128xf32, #tpu.memory_space<vmem>>, vector<4x128xf32>,
    return
  }
  func.func @transform_0(%arg0: i32) -> (i32, i32) {
    %c0_i32 = arith.constant 0 : i32
    %c0_i32_0 = arith.constant 0 : i32
    return %arg0, %c0_i32 : i32, i32
  }
  func.func @transform_1(%arg0: i32) -> (i32, i32) {
    %c0_i32 = arith.constant 0 : i32
    %c0_i32_0 = arith.constant 0 : i32
    %c0_i32_1 = arith.constant 0 : i32
    return %c0_i32, %c0_i32_0 : i32, i32
  }
  func.func @transform_2(%arg0: i32) -> (i32, i32) {
    %c0_i32 = arith.constant 0 : i32
    %c0_i32_0 = arith.constant 0 : i32
    %c0_i32_1 = arith.constant 0 : i32
    return %c0_i32, %c0_i32_0 : i32, i32
  }
  func.func @transform_3(%arg0: i32) -> (i32, i32) {
    %c0_i32 = arith.constant 0 : i32
    %c0_i32_0 = arith.constant 0 : i32
    return %arg0, %c0_i32 : i32, i32
  }
}

</mosaic_0001>

<llo_original>
// kernel: tpu_custom_call.1
$region0: #{tpu_custom_call.1}
  #allocation0 [shape = 'u32[]', space=smem, size = 0x4, offset = 0x4, fixed_abs, tag = 'smem constant byte address 0x4 - core index']
  #allocation1 [shape = 'u32[144,128]{1,0:T(1,128)}', space=vmem, size = 0x12000, scoped, tag = 'internal scratch']
  %s0 = inlined_call_operand.hbm [shape: f32[4,128], index: 0, kind: input, shape index: {}]
  %s1 = inlined_call_operand.hbm [shape: f32[1,128], index: 1, kind: input, shape index: {}]
  %s2 = inlined_call_operand.hbm [shape: f32[128,128], index: 2, kind: input, shape index: {}]
  %s3 = inlined_call_operand.hbm [shape: f32[4,128], index: 3, kind: output, shape index: {}]
  %s4 = sld [smem:[#allocation0]]
  $region34: #{tpu_custom_call.1} parent=0
    _
  %s6 = ssub.s32 1, %s4
  %s7 = scalar_select 0, %s6, %s4
  $region1: #{tpu_custom_call.1} parent=0
    #allocation2 [shape = 'u8[2048]{0}', space=vmem, size = 0x800, scoped, tag = 'input window, operand 0, single buffered']
    #allocation3 [shape = 's32[1]{0}', space=sflag, size = 0x4, scoped, tag = 'scoped memory for tpu_custom_call.1']
    #allocation4 [shape = 's32[1]{0}', space=sflag, size = 0x4, scoped, tag = 'scoped memory for tpu_custom_call.1']
    #allocation5 [shape = 'u8[512]{0}', space=vmem, size = 0x400, scoped, tag = 'input window, operand 1, single buffered']
    #allocation6 [shape = 's32[1]{0}', space=sflag, size = 0x4, scoped, tag = 'scoped memory for tpu_custom_call.1']
    #allocation7 [shape = 'u8[65536]{0}', space=vmem, size = 0x10000, scoped, tag = 'input window, operand 2, single buffered']
    #allocation8 [shape = 'u8[2048]{0}', space=vmem, size = 0x800, scoped, tag = 'output window, operand 0, single buffered']
    %8 = vsyncpa [#allocation3], 0
    %9 = vsyncpa [#allocation6], 0
    %10 = vsyncpa [#allocation4], 0
    // Predicated region
    $region2: #{tpu_custom_call.1} parent=1 // pred_check
      _
    $region3: #{tpu_custom_call.1} parent=1 // pred_check_branch
      %12 = sbr.rel (0) target = $region5
    $region4: #{tpu_custom_call.1} parent=1 // pred_region
      %s14 = ssub.s32 64, 64
      %15 = vsyncadd [#allocation3], %s14
      %s17 = sshll.u32 [#allocation2], 4
      %s18 = int_to_ptr.vmem [resolvable:$true] %s17
      %20 = dma.hbm_to_vmem [thread:$0]  %s0, 64, %s18, [#allocation3]
    $region5: #{tpu_custom_call.1} parent=1 // pred_fallthru
      _
    // Predicated region
    $region6: #{tpu_custom_call.1} parent=1 // pred_check
      _
    $region7: #{tpu_custom_call.1} parent=1 // pred_check_branch
      %22 = sbr.rel (0) target = $region9
    $region8: #{tpu_custom_call.1} parent=1 // pred_region
      %s24 = ssub.s32 16, 16
      %25 = vsyncadd [#allocation6], %s24
      %s27 = sshll.u32 [#allocation5], 4
      %s28 = int_to_ptr.vmem [resolvable:$true] %s27
      %30 = dma.hbm_to_vmem [thread:$0]  %s1, 16, %s28, [#allocation6]
    $region9: #{tpu_custom_call.1} parent=1 // pred_fallthru
      _
    // Predicated region
    $region10: #{tpu_custom_call.1} parent=1 // pred_check
      _
    $region11: #{tpu_custom_call.1} parent=1 // pred_check_branch
      %32 = sbr.rel (0) target = $region13
    $region12: #{tpu_custom_call.1} parent=1 // pred_region
      %s34 = ssub.s32 2048, 2048
      %35 = vsyncadd [#allocation6], %s34
      %s36 = sshll.u32 [#allocation7], 4
      %s37 = int_to_ptr.vmem [resolvable:$true] %s36
      %42 = dma.hbm_to_vmem [thread:$0]  %s2, 2048, %s37, [#allocation6], 128, 128, 8
    $region13: #{tpu_custom_call.1} parent=1 // pred_fallthru
      _
    // Predicated region
    $region14: #{tpu_custom_call.1} parent=1 // pred_check
      _
    $region15: #{tpu_custom_call.1} parent=1 // pred_check_branch
      %44 = sbr.rel (0) target = $region17
    $region16: #{tpu_custom_call.1} parent=1 // pred_region
      %45 = dma.done [#allocation3], 64
    $region17: #{tpu_custom_call.1} parent=1 // pred_fallthru
      _
    // Predicated region
    $region18: #{tpu_custom_call.1} parent=1 // pred_check
      _
    $region19: #{tpu_custom_call.1} parent=1 // pred_check_branch
      %47 = sbr.rel (0) target = $region21
    $region20: #{tpu_custom_call.1} parent=1 // pred_region
      %48 = dma.done [#allocation6], 16
    $region21: #{tpu_custom_call.1} parent=1 // pred_fallthru
      _
    // Predicated region
    $region22: #{tpu_custom_call.1} parent=1 // pred_check
      _
    $region23: #{tpu_custom_call.1} parent=1 // pred_check_branch
      %50 = sbr.rel (0) target = $region25
    $region24: #{tpu_custom_call.1} parent=1 // pred_region
      %51 = dma.done [#allocation6], 2048
    $region25: #{tpu_custom_call.1} parent=1 // pred_fallthru
      _
    %v52 = vld [vmem:[#allocation2] sm:$0xf]
    %v53 = vmul.f32 %v52, %v52
    %v54 = vld [vmem:[#allocation7] sm:$0xff]
    %v55 = vld [vmem:[#allocation7 + $0x8] sm:$0xff]
    %v56 = vld [vmem:[#allocation7 + $0x10] sm:$0xff]
    %v57 = vld [vmem:[#allocation7 + $0x18] sm:$0xff]
    %v58 = vld [vmem:[#allocation7 + $0x20] sm:$0xff]
    %v59 = vld [vmem:[#allocation7 + $0x28] sm:$0xff]
    %v60 = vld [vmem:[#allocation7 + $0x30] sm:$0xff]
    %v61 = vld [vmem:[#allocation7 + $0x38] sm:$0xff]
    %v62 = vld [vmem:[#allocation7 + $0x40] sm:$0xff]
    %v63 = vld [vmem:[#allocation7 + $0x48] sm:$0xff]
    %v64 = vld [vmem:[#allocation7 + $0x50] sm:$0xff]
    %v65 = vld [vmem:[#allocation7 + $0x58] sm:$0xff]
    %v66 = vld [vmem:[#allocation7 + $0x60] sm:$0xff]
    %v67 = vld [vmem:[#allocation7 + $0x68] sm:$0xff]
    %v68 = vld [vmem:[#allocation7 + $0x70] sm:$0xff]
    %v69 = vld [vmem:[#allocation7 + $0x78] sm:$0xff]
    %70 = vmatprep.subr.mxu0 0.0
    %71 = vmatpush1.msra.mxu0 %v54
    %72 = vmatprep.subr.mxu0 0.0
    %73 = vmatpush1.msra.mxu0 %v55
    %74 = vmatprep.subr.mxu0 0.0
    %75 = vmatpush1.msra.mxu0 %v56
    %76 = vmatprep.subr.mxu0 0.0
    %77 = vmatpush1.msra.mxu0 %v57
    %78 = vmatprep.subr.mxu0 0.0
    %79 = vmatpush1.msra.mxu0 %v58
    %80 = vmatprep.subr.mxu0 0.0
    %81 = vmatpush1.msra.mxu0 %v59
    %82 = vmatprep.subr.mxu0 0.0
    %83 = vmatpush1.msra.mxu0 %v60
    %84 = vmatprep.subr.mxu0 0.0
    %85 = vmatpush1.msra.mxu0 %v61
    %86 = vmatprep.subr.mxu0 0.0
    %87 = vmatpush1.msra.mxu0 %v62
    %88 = vmatprep.subr.mxu0 0.0
    %89 = vmatpush1.msra.mxu0 %v63
    %90 = vmatprep.subr.mxu0 0.0
    %91 = vmatpush1.msra.mxu0 %v64
    %92 = vmatprep.subr.mxu0 0.0
    %93 = vmatpush1.msra.mxu0 %v65
    %94 = vmatprep.subr.mxu0 0.0
    %95 = vmatpush1.msra.mxu0 %v66
    %96 = vmatprep.subr.mxu0 0.0
    %97 = vmatpush1.msra.mxu0 %v67
    %98 = vmatprep.subr.mxu0 0.0
    %99 = vmatpush1.msra.mxu0 %v68
    %100 = vmatprep.subr.mxu0 0.0
    %101 = vmatpush1.msra.mxu0 %v69
    %102 = vmatprep.subr.mxu0 0.0
    %103 = vmatpush1.msra.mxu0 0.0
    %104 = vmatprep.subr.mxu0 0.0
    %105 = vmatpush1.msra.mxu0 0.0
    %106 = vmatprep.subr.mxu0 0.0
    %107 = vmatpush1.msra.mxu0 0.0
    %108 = vmatprep.subr.mxu0 0.0
    %109 = vmatpush1.msra.mxu0 0.0
    %110 = vmatprep.subr.mxu0 0.0
    %111 = vmatpush1.msra.mxu0 0.0
    %112 = vmatprep.subr.mxu0 0.0
    %113 = vmatpush1.msra.mxu0 0.0
    %114 = vmatprep.subr.mxu0 0.0
    %115 = vmatpush1.msra.mxu0 0.0
    %116 = vmatprep.subr.mxu0 0.0
    %117 = vmatpush1.msra.mxu0 0.0
    %118 = vmatprep.subr.mxu0 0.0
    %119 = vmatpush1.msra.mxu0 0.0
    %120 = vmatprep.subr.mxu0 0.0
    %121 = vmatpush1.msra.mxu0 0.0
    %122 = vmatprep.subr.mxu0 0.0
    %123 = vmatpush1.msra.mxu0 0.0
    %124 = vmatprep.subr.mxu0 0.0
    %125 = vmatpush1.msra.mxu0 0.0
    %126 = vmatprep.subr.mxu0 0.0
    %127 = vmatpush1.msra.mxu0 0.0
    %128 = vmatprep.subr.mxu0 0.0
    %129 = vmatpush1.msra.mxu0 0.0
    %130 = vmatprep.subr.mxu0 0.0
    %131 = vmatpush1.msra.mxu0 0.0
    %132 = vmatprep.subr.mxu0 0.0
    %133 = vmatpush1.msra.mxu0 0.0
    %134 = vmatprep.mubr.f32.mxu0 0.0
    %135 = vmatmul.mubr.f32.gmra.mrb[0].mxu0 %v53
    %v136 = vpop.f32.mrb[0].mxu0
    %v137 = vadd.f32 0.0, %v136
    %v138 = vpop.f32.mrb[0].mxu0
    %139 = vdwg.mxu0
    %v140 = vmul.f32 %v137, 0.03125
    %v141 = vadd.f32 %v140, 1e-05
    %v142 = vrsqrt.pop %v141
    %v143 = vmul.f32 %v52, %v142
    %v144 = vld [vmem:[#allocation5] sm:$0x1]
    %v146 = vlaneseq
    %v147 = vshrl.u32 %v146, 7
    %v148 = vsub.s32 0, %v147
    %v149 = vrot.slane %v144, %v148
    %v151 = vmul.f32 %v143, %v149
    %152 = vst [vmem:[#allocation8] sm:$0xf] %v151
    // Predicated region
    $region26: #{tpu_custom_call.1} parent=1 // pred_check
      _
    $region27: #{tpu_custom_call.1} parent=1 // pred_check_branch
      %154 = sbr.rel (0) target = $region29
    $region28: #{tpu_custom_call.1} parent=1 // pred_region
      %s156 = ssub.s32 64, 64
      %157 = vsyncadd [#allocation4], %s156
      %s159 = sshll.u32 [#allocation8], 4
      %s160 = int_to_ptr.vmem [resolvable:$true] %s159
      %162 = dma.vmem_to_hbm [thread:$0]  %s160, 64, %s3, [#allocation4]
    $region29: #{tpu_custom_call.1} parent=1 // pred_fallthru
      _
    // Predicated region
    $region30: #{tpu_custom_call.1} parent=1 // pred_check
      _
    $region31: #{tpu_custom_call.1} parent=1 // pred_check_branch
      %164 = sbr.rel (0) target = $region33
    $region32: #{tpu_custom_call.1} parent=1 // pred_region
      %165 = dma.done [#allocation4], 64
    $region33: #{tpu_custom_call.1} parent=1 // pred_fallthru
      _
    %166 = vsyncpa [#allocation3], 1
    %167 = vsyncpa [#allocation6], 1
    %168 = vsyncpa [#allocation4], 1

</llo_original>
